<compile_context>
chip_gen: v7x
topology: tpu7x:2x2x1
jax: 0.10.0
libtpu: 0.0.40
codegen_flags: <defaults>
</compile_context>

<pallas_src>
import jax
import jax.numpy as jnp
from jax.experimental import pallas as pl
from jax.experimental.pallas import tpu as pltpu

_LANE = 128
_SUBLANE = 8
_MAX_TL = 2048                 # lane-dense column tile (multiple of 128)
_TILE_PAIR_BYTES = 4 << 20     # (input tile + output tile) budget -> ~8 MiB double-buffered


def _truncate_kernel(x_ref, o_ref):
    # x_ref: (TB, TL_in) input tile, o_ref: (TB, TL_out) output tile,
    # TL_out <= TL_in.  Static leading-lane slice -> straight copy.
    o_ref[...] = x_ref[:, : o_ref.shape[1]]


def truncate(x: jax.Array, max_seq_len: int) -> jax.Array:
    """Pallas implementation of Truncate.forward for [B, S] (or [S]) token ids."""
    squeeze = x.ndim == 1
    if squeeze:                       # single sequence (List[int]) -> batch of one
        x = x[None, :]
    B, S = x.shape
    L = min(max(int(max_seq_len), 0), S)

    # Short-circuits: no truncation or empty result -> no kernel launch needed.
    if L == S:
        return x[0] if squeeze else x
    if L == 0 or B == 0:
        out = x[:, :0]
        return out[0] if squeeze else out

    itemsize = jnp.dtype(x.dtype).itemsize

    if L % _LANE == 0:
        # Lane-dense column tiles over the kept [:, :L] window only.
        tl_in = tl_out = min(L, _MAX_TL)
        grid_cols = pl.cdiv(L, tl_out)
        col_map = lambda i, j: (i, j)
    else:
        # Ragged L: output keeps its full width (== full out dim, so legal);
        # input window is rounded up to the next lane multiple (capped at S)
        # so we still skip (almost all of) the discarded columns.
        tl_out = L
        tl_in = min(((L + _LANE - 1) // _LANE) * _LANE, S)
        grid_cols = 1
        col_map = lambda i, j: (i, 0)

    # Row tile: multiple of 8 (or the full batch) sized so the double-buffered
    # in+out footprint stays comfortably inside VMEM on all generations.
    bytes_per_row = (tl_in + tl_out) * itemsize
    rows_budget = max(1, _TILE_PAIR_BYTES // bytes_per_row)
    if B <= rows_budget:
        tb = B
    else:
        tb = max(_SUBLANE, (min(rows_budget, 512) // _SUBLANE) * _SUBLANE)
    # TODO(synk): degenerate case of a huge, ragged, non-lane-aligned L with many
    # rows could still exceed the row budget at tb=8; not expected for token ids.

    grid = (pl.cdiv(B, tb), grid_cols)

    out = pl.pallas_call(
        _truncate_kernel,
        out_shape=jax.ShapeDtypeStruct((B, L), x.dtype),
        grid=grid,
        in_specs=[pl.BlockSpec((tb, tl_in), col_map)],
        out_specs=pl.BlockSpec((tb, tl_out), col_map),
        compiler_params=pltpu.CompilerParams(
            dimension_semantics=("parallel", "parallel")),
    )(x)

    return out[0] if squeeze else out


if __name__ == "__main__":
    key = jax.random.PRNGKey(0)

    # Small batched case (ragged L path): B=2, S=16, max_seq_len=8.
    B, S = 2, 16
    max_seq_len = 8
    tokens = jax.random.randint(key, (B, S), minval=0, maxval=1000, dtype=jnp.int32)
    out = truncate(tokens, max_seq_len)
    jax.block_until_ready(out)
    ref = tokens[:, :max_seq_len]
    assert out.shape == (B, max_seq_len), out.shape
    assert out.dtype == tokens.dtype
    assert bool(jnp.all(out == ref))

    # Single-sequence (1-D) path.
    seq = jax.random.randint(jax.random.PRNGKey(1), (S,), 0, 1000, dtype=jnp.int32)
    out1 = truncate(seq, max_seq_len)
    jax.block_until_ready(out1)
    assert bool(jnp.all(out1 == seq[:max_seq_len]))

    # Lane-aligned path (L multiple of 128): B=16, S=512, max_seq_len=256.
    tokens2 = jax.random.randint(jax.random.PRNGKey(2), (16, 512), 0, 1000,
                                 dtype=jnp.int32)
    out2 = truncate(tokens2, 256)
    jax.block_until_ready(out2)
    assert out2.shape == (16, 256)
    assert bool(jnp.all(out2 == tokens2[:, :256]))

    # No-truncation short-circuit.
    out3 = truncate(tokens, 64)
    jax.block_until_ready(out3)
    assert bool(jnp.all(out3 == tokens))

    print("KERNEL_OK")
</pallas_src>

<mosaic_0001>
module attributes {stable_mosaic.version = 11 : i64} {
  func.func @_truncate_kernel(%arg0: i32, %arg1: i32, %arg2: memref<2x16xi32, #tpu.memory_space<vmem>>, %arg3: memref<2x8xi32, #tpu.memory_space<vmem>>) attributes {dimension_semantics = [#tpu.dimension_semantics<parallel>, #tpu.dimension_semantics<parallel>], iteration_bounds = array<i64: 1, 1>, scalar_prefetch = 0 : i64, scratch_operands = 0 : i64, tpu.core_type = #tpu.core_type<tc>, window_params = [{transform_indices = @transform_0, window_bounds = array<i64: 2, 16>}, {transform_indices = @transform_1, window_bounds = array<i64: 2, 8>}]} {
    %c0 = arith.constant 0 : index
    %c0_0 = arith.constant 0 : index
    %0 = vector.load %arg2[%c0, %c0_0] : memref<2x16xi32, #tpu.memory_space<vmem>>, vector<2x8xi32>
    %c0_1 = arith.constant 0 : index
    %c0_2 = arith.constant 0 : index
    %1 = vector.load %arg3[%c0_1, %c0_2] : memref<2x8xi32, #tpu.memory_space<vmem>>, vector<2x8xi32>
    tpu.vector_store %arg3[%c0_1, %c0_2], %0 {strides = array<i32>} : memref<2x8xi32, #tpu.memory_space<vmem>>, vector<2x8xi32>,
    return
  }
  func.func @transform_0(%arg0: i32, %arg1: i32) -> (i32, i32) {
    %c0_i32 = arith.constant 0 : i32
    %c0_i32_0 = arith.constant 0 : i32
    return %arg0, %c0_i32 : i32, i32
  }
  func.func @transform_1(%arg0: i32, %arg1: i32) -> (i32, i32) {
    %c0_i32 = arith.constant 0 : i32
    %c0_i32_0 = arith.constant 0 : i32
    return %arg0, %c0_i32 : i32, i32
  }
}

</mosaic_0001>

<llo_original>
// kernel: tpu_custom_call.1
$region0: #{tpu_custom_call.1}
  #allocation0 [shape = 'u32[]', space=smem, size = 0x4, offset = 0x4, fixed_abs, tag = 'smem constant byte address 0x4 - core index']
  #allocation1 [shape = 'u32[144,128]{1,0:T(1,128)}', space=vmem, size = 0x12000, scoped, tag = 'internal scratch']
  %s0 = inlined_call_operand.hbm [shape: s32[2,16], index: 0, kind: input, shape index: {}]
  %s1 = inlined_call_operand.hbm [shape: s32[2,8], index: 1, kind: output, shape index: {}]
  %s2 = sld [smem:[#allocation0]]
  $region18: #{tpu_custom_call.1} parent=0
    _
  %s4 = ssub.s32 1, %s2
  %s5 = scalar_select 0, %s4, %s2
  $region1: #{tpu_custom_call.1} parent=0
    #allocation2 [shape = 'u8[1024]{0}', space=vmem, size = 0x400, scoped, tag = 'input window, operand 0, single buffered']
    #allocation3 [shape = 's32[1]{0}', space=sflag, size = 0x4, scoped, tag = 'scoped memory for tpu_custom_call.1']
    #allocation4 [shape = 's32[1]{0}', space=sflag, size = 0x4, scoped, tag = 'scoped memory for tpu_custom_call.1']
    #allocation5 [shape = 'u8[1024]{0}', space=vmem, size = 0x400, scoped, tag = 'output window, operand 0, single buffered']
    %6 = vsyncpa [#allocation3], 0
    %7 = vsyncpa [#allocation4], 0
    // Predicated region
    $region2: #{tpu_custom_call.1} parent=1 // pred_check
      _
    $region3: #{tpu_custom_call.1} parent=1 // pred_check_branch
      %9 = sbr.rel (0) target = $region5
    $region4: #{tpu_custom_call.1} parent=1 // pred_region
      %s11 = ssub.s32 32, 32
      %12 = vsyncadd [#allocation3], %s11
      %s14 = sshll.u32 [#allocation2], 4
      %s15 = int_to_ptr.vmem [resolvable:$true] %s14
      %17 = dma.hbm_to_vmem [thread:$0]  %s0, 32, %s15, [#allocation3]
    $region5: #{tpu_custom_call.1} parent=1 // pred_fallthru
      _
    // Predicated region
    $region6: #{tpu_custom_call.1} parent=1 // pred_check
      _
    $region7: #{tpu_custom_call.1} parent=1 // pred_check_branch
      %19 = sbr.rel (0) target = $region9
    $region8: #{tpu_custom_call.1} parent=1 // pred_region
      %20 = dma.done [#allocation3], 32
    $region9: #{tpu_custom_call.1} parent=1 // pred_fallthru
      _
    %v21 = vld [vmem:[#allocation2] sm:$0x3]
    %vm22 = vcmask 58368
    %23 = vst.msk [vmem:[#allocation5] sm:$0x3] %vm22, %v21
    // Predicated region
    $region10: #{tpu_custom_call.1} parent=1 // pred_check
      _
    $region11: #{tpu_custom_call.1} parent=1 // pred_check_branch
      %25 = sbr.rel (0) target = $region13
    $region12: #{tpu_custom_call.1} parent=1 // pred_region
      %s27 = ssub.s32 32, 32
      %28 = vsyncadd [#allocation4], %s27
      %s30 = sshll.u32 [#allocation5], 4
      %s31 = int_to_ptr.vmem [resolvable:$true] %s30
      %33 = dma.vmem_to_hbm [thread:$0]  %s31, 32, %s1, [#allocation4]
    $region13: #{tpu_custom_call.1} parent=1 // pred_fallthru
      _
    // Predicated region
    $region14: #{tpu_custom_call.1} parent=1 // pred_check
      _
    $region15: #{tpu_custom_call.1} parent=1 // pred_check_branch
      %35 = sbr.rel (0) target = $region17
    $region16: #{tpu_custom_call.1} parent=1 // pred_region
      %36 = dma.done [#allocation4], 32
    $region17: #{tpu_custom_call.1} parent=1 // pred_fallthru
      _
    %37 = vsyncpa [#allocation3], 1
    %38 = vsyncpa [#allocation4], 1

</llo_original>
